<compile_context>
chip_gen: v5e
topology: v5e:2x2
jax: 0.10.0
libtpu: 0.0.40
codegen_flags: <defaults>
</compile_context>

<pallas_src>
import functools

import jax
import jax.numpy as jnp
from jax import lax
from jax.experimental import pallas as pl
from jax.experimental.pallas import tpu as pltpu

_LANES = 128
_DEFAULT_MAX_TILE_ROWS = 1024  # 3 * 1024 * 128 * 4 B = 1.5 MiB per stream per buffer
_DEFAULT_MIN_TILES = 2         # shard the "parallel" grid axis across v7x's two TCs


def _round_up(x: int, m: int) -> int:
    return ((x + m - 1) // m) * m


# --------------------------------------------------------------------------------------
# Kernels: refs are (3, TM, 128) coordinate-major VMEM tiles; ref[c] is a full (TM, 128)
# tile for coordinate c (lane- and sublane-dense VPU math, lane-dense 128-wide stores).
# --------------------------------------------------------------------------------------
def _project_clip_kernel(ori_ref, adv_ref, nrm_ref, out_ref, *, budget):
    ox, oy, oz = ori_ref[0], ori_ref[1], ori_ref[2]
    nx, ny, nz = nrm_ref[0], nrm_ref[1], nrm_ref[2]

    dx = adv_ref[0] - ox
    dy = adv_ref[1] - oy
    dz = adv_ref[2] - oz

    # ---- ProjectInnerPoints (cross products removed via vector identities) ----
    inner = dx * nx + dy * ny + dz * nz
    inner_mask = inner < 0.0

    n_sq = nx * nx + ny * ny + nz * nz
    d_sq0 = dx * dx + dy * dy + dz * dz

    # ||cross(n, d)||^2 = ||n||^2 ||d||^2 - (n.d)^2   (clamp: cancellation can go < 0)
    vng_sq = jnp.maximum(n_sq * d_sq0 - inner * inner, 0.0)

    # vref = cross(cross(n, d), n) = d*||n||^2 - n*(n.d)
    vref_x = dx * n_sq - nx * inner
    vref_y = dy * n_sq - ny * inner
    vref_z = dz * n_sq - nz * inner
    # ||vref||^2 = ||vng||^2 * ||n||^2   (vng ⟂ n)
    vref_sq = vng_sq * n_sq

    # 1 / (||vref|| + 1e-9)  ~=  rsqrt(||vref||^2 + 1e-18)  (EUP rsqrt; differs from the
    # reference epsilon placement only when ||vref|| ~ 1e-9, where diff_proj ~ 0 anyway).
    inv_vref = lax.rsqrt(vref_sq + 1e-18)

    # opposite_mask: inner & (||vng|| < 1e-6)  <=>  inner & (||vng||^2 < 1e-12)
    # folded once into the shared scalar plane (single select instead of 3).
    opp = inner_mask & (vng_sq < 1e-12)
    inv_vref = jnp.where(opp, 0.0, inv_vref)

    dp_x = dx * vref_x * inv_vref
    dp_y = dy * vref_y * inv_vref
    dp_z = dz * vref_z * inv_vref

    # diff[inner_mask] = diff_proj[inner_mask]
    dx = jnp.where(inner_mask, dp_x, dx)
    dy = jnp.where(inner_mask, dp_y, dy)
    dz = jnp.where(inner_mask, dp_z, dz)

    # ---- ClipPointsLinf (per-point L2 clip) ----
    d_sq = dx * dx + dy * dy + dz * dz
    scale = jnp.minimum(budget * lax.rsqrt(d_sq + 1e-18), 1.0)

    out_ref[0] = ox + dx * scale
    out_ref[1] = oy + dy * scale
    out_ref[2] = oz + dz * scale


def _clip_only_kernel(ori_ref, adv_ref, out_ref, *, budget):
    ox, oy, oz = ori_ref[0], ori_ref[1], ori_ref[2]
    dx = adv_ref[0] - ox
    dy = adv_ref[1] - oy
    dz = adv_ref[2] - oz
    d_sq = dx * dx + dy * dy + dz * dz
    scale = jnp.minimum(budget * lax.rsqrt(d_sq + 1e-18), 1.0)
    out_ref[0] = ox + dx * scale
    out_ref[1] = oy + dy * scale
    out_ref[2] = oz + dz * scale


# --------------------------------------------------------------------------------------
# Module
# --------------------------------------------------------------------------------------
class ProjectInnerClipLinf:
    """JAX/Pallas port of the PyTorch ProjectInnerClipLinf module.

    Fast path for iterative attacks:
        ori_p = module.to_planes(ori);  nrm_p = module.to_planes(normal)   # once
        adv_p = module.to_planes(adv)                                      # once
        for _ in range(steps):
            adv_p = ...gradient update on planes...
            adv_p = module.apply_planes(ori_p, adv_p, nrm_p)               # Pallas kernel
        adv = ProjectInnerClipLinf.from_planes(adv_p, B, K)                # once
    """

    def __init__(self, budget: float,
                 max_tile_rows: int = _DEFAULT_MAX_TILE_ROWS,
                 min_tiles: int = _DEFAULT_MIN_TILES):
        assert max_tile_rows % 8 == 0
        self.budget = float(budget)
        self.max_tile_rows = int(max_tile_rows)
        self.min_tiles = int(min_tiles)

    # ---------------- tiling ----------------
    def _choose_num_tiles(self, m: int) -> int:
        nt = pl.cdiv(m, self.max_tile_rows)
        if m >= 8 * self.min_tiles:      # enough rows for min_tiles tiles of >= 8 rows
            nt = max(nt, self.min_tiles)
        cap = m // 8 if m >= 8 else 1    # keep every tile at least 8 sublanes tall
        return max(1, min(nt, cap))

    def _tiling_for_points(self, n_points: int):
        m = pl.cdiv(n_points, _LANES)
        nt = self._choose_num_tiles(m)
        tm = _round_up(pl.cdiv(m, nt), 8)
        return nt, tm, nt * tm

    # ---------------- layout helpers: [B,K,3] <-> [3, m_pad, 128] planes ----------------
    def to_planes(self, x):
        B, K, C = x.shape
        assert C == 3
        n = B * K
        _, _, m_pad = self._tiling_for_points(n)
        planes = jnp.transpose(x, (2, 0, 1)).reshape(3, n)
        planes = jnp.pad(planes, ((0, 0), (0, m_pad * _LANES - n)))
        return planes.reshape(3, m_pad, _LANES)

    @staticmethod
    def from_planes(planes, B, K):
        flat = planes.reshape(3, -1)[:, : B * K]
        return jnp.transpose(flat.reshape(3, B, K), (1, 2, 0))

    # ---------------- plane-level fast path ----------------
    def apply_planes(self, ori_p, adv_p, nrm_p=None, *, num_tiles=None):
        three, m_pad, lanes = adv_p.shape
        assert three == 3 and lanes == _LANES and m_pad % 8 == 0

        if num_tiles is None:
            nt = self._choose_num_tiles(m_pad)
            # keep tiles (8,128)-aligned and evenly dividing m_pad
            while nt > 1 and (m_pad % nt != 0 or (m_pad // nt) % 8 != 0):
                nt -= 1
        else:
            nt = int(num_tiles)
        tm = m_pad // nt

        spec = pl.BlockSpec((3, tm, _LANES), lambda i: (0, i, 0))
        out_shape = jax.ShapeDtypeStruct((3, m_pad, _LANES), adv_p.dtype)

        block_bytes = 3 * tm * _LANES * 4
        n_in = 2 if nrm_p is None else 3
        vmem_bytes = 2 * (n_in + 1) * block_bytes + (4 << 20)  # double-buffered + headroom
        cparams = pltpu.CompilerParams(
            dimension_semantics=("parallel",),
            vmem_limit_bytes=int(min(max(vmem_bytes, 16 << 20), 48 << 20)),
        )

        if nrm_p is None:
            kernel = functools.partial(_clip_only_kernel, budget=self.budget)
            in_specs = [spec, spec]
            args = (ori_p, adv_p)
        else:
            kernel = functools.partial(_project_clip_kernel, budget=self.budget)
            in_specs = [spec, spec, spec]
            args = (ori_p, adv_p, nrm_p)

        return pl.pallas_call(
            kernel,
            out_shape=out_shape,
            grid_spec=pl.GridSpec(grid=(nt,), in_specs=in_specs, out_specs=spec),
            compiler_params=cparams,
            # adv plane buffer reused as output; donate it at the jit boundary in a PGD
            # loop for a true in-place update (otherwise XLA inserts a copy — still valid).
            input_output_aliases={1: 0},
        )(*args)

    # ---------------- [B,K,3] convenience wrapper ----------------
    def __call__(self, ori_pcs, adv_pcs, normal=None):
        B, K, C = adv_pcs.shape
        assert C == 3
        nt, _, _ = self._tiling_for_points(B * K)
        ori_p = self.to_planes(ori_pcs)
        adv_p = self.to_planes(adv_pcs)
        nrm_p = None if normal is None else self.to_planes(normal)
        out_p = self.apply_planes(ori_p, adv_p, nrm_p, num_tiles=nt)
        return self.from_planes(out_p, B, K)


# ---------------- pure-JAX reference (mirrors the PyTorch code) ----------------
def _reference(ori_pcs, adv_pcs, normal, budget):
    diff = adv_pcs - ori_pcs
    if normal is not None:
        inner = jnp.sum(diff * normal, axis=-1)
        inner_mask = inner < 0.0
        vng = jnp.cross(normal, diff)
        vng_norm = jnp.linalg.norm(vng, axis=-1)
        vref = jnp.cross(vng, normal)
        vref_norm = jnp.linalg.norm(vref, axis=-1)
        diff_proj = diff * vref / (vref_norm[..., None] + 1e-9)
        opp = (inner_mask & (vng_norm < 1e-6))[..., None]
        diff_proj = jnp.where(opp, 0.0, diff_proj)
        diff = jnp.where(inner_mask[..., None], diff_proj, diff)
    adv = ori_pcs + diff
    diff = adv - ori_pcs
    norm = jnp.linalg.norm(diff, axis=-1)
    scale = jnp.minimum(budget / (norm + 1e-9), 1.0)
    return ori_pcs + diff * scale[..., None]


if __name__ == "__main__":
    budget = 0.05
    key = jax.random.PRNGKey(0)
    k1, k2, k3 = jax.random.split(key, 3)

    # ---- case 1: small [B, K, 3] cloud, projection + clip and clip-only ----
    B, K = 2, 128
    ori = jax.random.normal(k1, (B, K, 3), dtype=jnp.float32)
    adv = ori + 0.1 * jax.random.normal(k2, (B, K, 3), dtype=jnp.float32)
    nrm = jax.random.normal(k3, (B, K, 3), dtype=jnp.float32)
    nrm = nrm / (jnp.linalg.norm(nrm, axis=-1, keepdims=True) + 1e-9)

    module = ProjectInnerClipLinf(budget=budget)

    out = jax.block_until_ready(module(ori, adv, nrm))
    out_none = jax.block_until_ready(module(ori, adv, None))

    ref = _reference(ori, adv, nrm, budget)
    ref_none = _reference(ori, adv, None, budget)

    assert out.shape == (B, K, 3) and out.dtype == jnp.float32
    assert jnp.allclose(out, ref, atol=1e-5, rtol=1e-5)
    assert jnp.allclose(out_none, ref_none, atol=1e-5, rtol=1e-5)

    # ---- case 1b: plane-level fast path (as used inside a PGD loop) ----
    ori_p = module.to_planes(ori)
    adv_p = module.to_planes(adv)
    nrm_p = module.to_planes(nrm)
    out_p = jax.block_until_ready(module.apply_planes(ori_p, adv_p, nrm_p))
    out_from_planes = ProjectInnerClipLinf.from_planes(out_p, B, K)
    assert jnp.allclose(out_from_planes, ref, atol=1e-5, rtol=1e-5)

    # ---- case 2: multi-tile grid (small tile cap -> 4 tiles) ----
    B2, K2 = 2, 2048
    ori2 = jax.random.normal(k1, (B2, K2, 3), dtype=jnp.float32)
    adv2 = ori2 + 0.1 * jax.random.normal(k2, (B2, K2, 3), dtype=jnp.float32)
    nrm2 = jax.random.normal(k3, (B2, K2, 3), dtype=jnp.float32)
    nrm2 = nrm2 / (jnp.linalg.norm(nrm2, axis=-1, keepdims=True) + 1e-9)

    module_small_tiles = ProjectInnerClipLinf(budget=budget, max_tile_rows=8)
    out2 = jax.block_until_ready(module_small_tiles(ori2, adv2, nrm2))
    ref2 = _reference(ori2, adv2, nrm2, budget)
    assert jnp.allclose(out2, ref2, atol=1e-5, rtol=1e-5)

    # ---- case 3: ragged point count (n not a multiple of 128 -> zero-padded lanes) ----
    B3, K3 = 3, 100
    ori3 = jax.random.normal(k1, (B3, K3, 3), dtype=jnp.float32)
    adv3 = ori3 + 0.1 * jax.random.normal(k2, (B3, K3, 3), dtype=jnp.float32)
    nrm3 = jax.random.normal(k3, (B3, K3, 3), dtype=jnp.float32)
    nrm3 = nrm3 / (jnp.linalg.norm(nrm3, axis=-1, keepdims=True) + 1e-9)
    out3 = jax.block_until_ready(module(ori3, adv3, nrm3))
    ref3 = _reference(ori3, adv3, nrm3, budget)
    assert jnp.allclose(out3, ref3, atol=1e-5, rtol=1e-5)

    print("KERNEL_OK")
</pallas_src>

<mosaic_0001>
module attributes {stable_mosaic.version = 11 : i64} {
  func.func @_project_clip_kernel(%arg0: i32, %arg1: memref<3x8x128xf32, #tpu.memory_space<vmem>>, %arg2: memref<3x8x128xf32, #tpu.memory_space<vmem>>, %arg3: memref<3x8x128xf32, #tpu.memory_space<vmem>>, %arg4: memref<3x8x128xf32, #tpu.memory_space<vmem>>) attributes {dimension_semantics = [#tpu.dimension_semantics<parallel>], iteration_bounds = array<i64: 1>, scalar_prefetch = 0 : i64, scratch_operands = 0 : i64, tpu.core_type = #tpu.core_type<tc>, window_params = [{transform_indices = @transform_0, window_bounds = array<i64: 3, 8, 128>}, {transform_indices = @transform_1, window_bounds = array<i64: 3, 8, 128>}, {transform_indices = @transform_2, window_bounds = array<i64: 3, 8, 128>}, {transform_indices = @transform_3, window_bounds = array<i64: 3, 8, 128>}]} {
    %c0 = arith.constant 0 : index
    %c0_0 = arith.constant 0 : index
    %c0_1 = arith.constant 0 : index
    %0 = vector.load %arg1[%c0, %c0_0, %c0_1] : memref<3x8x128xf32, #tpu.memory_space<vmem>>, vector<1x8x128xf32>
    %1 = vector.shape_cast %0 : vector<1x8x128xf32> to vector<8x128xf32>
    %c1 = arith.constant 1 : index
    %c0_2 = arith.constant 0 : index
    %c0_3 = arith.constant 0 : index
    %2 = vector.load %arg1[%c1, %c0_2, %c0_3] : memref<3x8x128xf32, #tpu.memory_space<vmem>>, vector<1x8x128xf32>
    %3 = vector.shape_cast %2 : vector<1x8x128xf32> to vector<8x128xf32>
    %c2 = arith.constant 2 : index
    %c0_4 = arith.constant 0 : index
    %c0_5 = arith.constant 0 : index
    %4 = vector.load %arg1[%c2, %c0_4, %c0_5] : memref<3x8x128xf32, #tpu.memory_space<vmem>>, vector<1x8x128xf32>
    %5 = vector.shape_cast %4 : vector<1x8x128xf32> to vector<8x128xf32>
    %c0_6 = arith.constant 0 : index
    %c0_7 = arith.constant 0 : index
    %c0_8 = arith.constant 0 : index
    %6 = vector.load %arg3[%c0_6, %c0_7, %c0_8] : memref<3x8x128xf32, #tpu.memory_space<vmem>>, vector<1x8x128xf32>
    %7 = vector.shape_cast %6 : vector<1x8x128xf32> to vector<8x128xf32>
    %c1_9 = arith.constant 1 : index
    %c0_10 = arith.constant 0 : index
    %c0_11 = arith.constant 0 : index
    %8 = vector.load %arg3[%c1_9, %c0_10, %c0_11] : memref<3x8x128xf32, #tpu.memory_space<vmem>>, vector<1x8x128xf32>
    %9 = vector.shape_cast %8 : vector<1x8x128xf32> to vector<8x128xf32>
    %c2_12 = arith.constant 2 : index
    %c0_13 = arith.constant 0 : index
    %c0_14 = arith.constant 0 : index
    %10 = vector.load %arg3[%c2_12, %c0_13, %c0_14] : memref<3x8x128xf32, #tpu.memory_space<vmem>>, vector<1x8x128xf32>
    %11 = vector.shape_cast %10 : vector<1x8x128xf32> to vector<8x128xf32>
    %c0_15 = arith.constant 0 : index
    %c0_16 = arith.constant 0 : index
    %c0_17 = arith.constant 0 : index
    %12 = vector.load %arg2[%c0_15, %c0_16, %c0_17] : memref<3x8x128xf32, #tpu.memory_space<vmem>>, vector<1x8x128xf32>
    %13 = vector.shape_cast %12 : vector<1x8x128xf32> to vector<8x128xf32>
    %14 = arith.subf %13, %1 : vector<8x128xf32>
    %c1_18 = arith.constant 1 : index
    %c0_19 = arith.constant 0 : index
    %c0_20 = arith.constant 0 : index
    %15 = vector.load %arg2[%c1_18, %c0_19, %c0_20] : memref<3x8x128xf32, #tpu.memory_space<vmem>>, vector<1x8x128xf32>
    %16 = vector.shape_cast %15 : vector<1x8x128xf32> to vector<8x128xf32>
    %17 = arith.subf %16, %3 : vector<8x128xf32>
    %c2_21 = arith.constant 2 : index
    %c0_22 = arith.constant 0 : index
    %c0_23 = arith.constant 0 : index
    %18 = vector.load %arg2[%c2_21, %c0_22, %c0_23] : memref<3x8x128xf32, #tpu.memory_space<vmem>>, vector<1x8x128xf32>
    %19 = vector.shape_cast %18 : vector<1x8x128xf32> to vector<8x128xf32>
    %20 = arith.subf %19, %5 : vector<8x128xf32>
    %21 = arith.mulf %14, %7 : vector<8x128xf32>
    %22 = arith.mulf %17, %9 : vector<8x128xf32>
    %23 = arith.addf %21, %22 : vector<8x128xf32>
    %24 = arith.mulf %20, %11 : vector<8x128xf32>
    %25 = arith.addf %23, %24 : vector<8x128xf32>
    %cst = arith.constant 0.000000e+00 : f32
    %26 = vector.broadcast %cst : f32 to vector<8x128xf32>
    %27 = arith.cmpf olt, %25, %26 : vector<8x128xf32>
    %28 = arith.mulf %7, %7 : vector<8x128xf32>
    %29 = arith.mulf %9, %9 : vector<8x128xf32>
    %30 = arith.addf %28, %29 : vector<8x128xf32>
    %31 = arith.mulf %11, %11 : vector<8x128xf32>
    %32 = arith.addf %30, %31 : vector<8x128xf32>
    %33 = arith.mulf %14, %14 : vector<8x128xf32>
    %34 = arith.mulf %17, %17 : vector<8x128xf32>
    %35 = arith.addf %33, %34 : vector<8x128xf32>
    %36 = arith.mulf %20, %20 : vector<8x128xf32>
    %37 = arith.addf %35, %36 : vector<8x128xf32>
    %38 = arith.mulf %32, %37 : vector<8x128xf32>
    %39 = arith.mulf %25, %25 : vector<8x128xf32>
    %40 = arith.subf %38, %39 : vector<8x128xf32>
    %cst_24 = arith.constant 0.000000e+00 : f32
    %41 = vector.broadcast %cst_24 : f32 to vector<8x128xf32>
    %42 = arith.maximumf %40, %41 : vector<8x128xf32>
    %43 = arith.mulf %14, %32 : vector<8x128xf32>
    %44 = arith.mulf %7, %25 : vector<8x128xf32>
    %45 = arith.subf %43, %44 : vector<8x128xf32>
    %46 = arith.mulf %17, %32 : vector<8x128xf32>
    %47 = arith.mulf %9, %25 : vector<8x128xf32>
    %48 = arith.subf %46, %47 : vector<8x128xf32>
    %49 = arith.mulf %20, %32 : vector<8x128xf32>
    %50 = arith.mulf %11, %25 : vector<8x128xf32>
    %51 = arith.subf %49, %50 : vector<8x128xf32>
    %52 = arith.mulf %42, %32 : vector<8x128xf32>
    %cst_25 = arith.constant 1.000000e-18 : f32
    %53 = vector.broadcast %cst_25 : f32 to vector<8x128xf32>
    %54 = arith.addf %52, %53 : vector<8x128xf32>
    %55 = math.rsqrt %54 : vector<8x128xf32>
    %cst_26 = arith.constant 9.99999996E-13 : f32
    %56 = vector.broadcast %cst_26 : f32 to vector<8x128xf32>
    %57 = arith.cmpf olt, %42, %56 : vector<8x128xf32>
    %58 = arith.andi %27, %57 : vector<8x128xi1>
    %cst_27 = arith.constant 0.000000e+00 : f32
    %59 = vector.broadcast %cst_27 : f32 to vector<8x128xf32>
    %60 = arith.select %58, %59, %55 : vector<8x128xi1>, vector<8x128xf32>
    %61 = arith.mulf %14, %45 : vector<8x128xf32>
    %62 = arith.mulf %61, %60 : vector<8x128xf32>
    %63 = arith.mulf %17, %48 : vector<8x128xf32>
    %64 = arith.mulf %63, %60 : vector<8x128xf32>
    %65 = arith.mulf %20, %51 : vector<8x128xf32>
    %66 = arith.mulf %65, %60 : vector<8x128xf32>
    %67 = arith.select %27, %62, %14 : vector<8x128xi1>, vector<8x128xf32>
    %68 = arith.select %27, %64, %17 : vector<8x128xi1>, vector<8x128xf32>
    %69 = arith.select %27, %66, %20 : vector<8x128xi1>, vector<8x128xf32>
    %70 = arith.mulf %67, %67 : vector<8x128xf32>
    %71 = arith.mulf %68, %68 : vector<8x128xf32>
    %72 = arith.addf %70, %71 : vector<8x128xf32>
    %73 = arith.mulf %69, %69 : vector<8x128xf32>
    %74 = arith.addf %72, %73 : vector<8x128xf32>
    %cst_28 = arith.constant 1.000000e-18 : f32
    %75 = vector.broadcast %cst_28 : f32 to vector<8x128xf32>
    %76 = arith.addf %74, %75 : vector<8x128xf32>
    %77 = math.rsqrt %76 : vector<8x128xf32>
    %cst_29 = arith.constant 5.000000e-02 : f32
    %78 = vector.broadcast %cst_29 : f32 to vector<8x128xf32>
    %79 = arith.mulf %78, %77 : vector<8x128xf32>
    %cst_30 = arith.constant 1.000000e+00 : f32
    %80 = vector.broadcast %cst_30 : f32 to vector<8x128xf32>
    %81 = arith.minimumf %79, %80 : vector<8x128xf32>
    %82 = arith.mulf %67, %81 : vector<8x128xf32>
    %83 = arith.addf %1, %82 : vector<8x128xf32>
    %c0_31 = arith.constant 0 : index
    %c0_32 = arith.constant 0 : index
    %c0_33 = arith.constant 0 : index
    %84 = vector.load %arg4[%c0_31, %c0_32, %c0_33] : memref<3x8x128xf32, #tpu.memory_space<vmem>>, vector<1x8x128xf32>
    %85 = vector.shape_cast %84 : vector<1x8x128xf32> to vector<8x128xf32>
    %86 = vector.shape_cast %83 : vector<8x128xf32> to vector<1x8x128xf32>
    tpu.vector_store %arg4[%c0_31, %c0_32, %c0_33], %86 {strides = array<i32>} : memref<3x8x128xf32, #tpu.memory_space<vmem>>, vector<1x8x128xf32>,
    %87 = arith.mulf %68, %81 : vector<8x128xf32>
    %88 = arith.addf %3, %87 : vector<8x128xf32>
    %c1_34 = arith.constant 1 : index
    %c0_35 = arith.constant 0 : index
    %c0_36 = arith.constant 0 : index
    %89 = vector.load %arg4[%c1_34, %c0_35, %c0_36] : memref<3x8x128xf32, #tpu.memory_space<vmem>>, vector<1x8x128xf32>
    %90 = vector.shape_cast %89 : vector<1x8x128xf32> to vector<8x128xf32>
    %91 = vector.shape_cast %88 : vector<8x128xf32> to vector<1x8x128xf32>
    tpu.vector_store %arg4[%c1_34, %c0_35, %c0_36], %91 {strides = array<i32>} : memref<3x8x128xf32, #tpu.memory_space<vmem>>, vector<1x8x128xf32>,
    %92 = arith.mulf %69, %81 : vector<8x128xf32>
    %93 = arith.addf %5, %92 : vector<8x128xf32>
    %c2_37 = arith.constant 2 : index
    %c0_38 = arith.constant 0 : index
    %c0_39 = arith.constant 0 : index
    %94 = vector.load %arg4[%c2_37, %c0_38, %c0_39] : memref<3x8x128xf32, #tpu.memory_space<vmem>>, vector<1x8x128xf32>
    %95 = vector.shape_cast %94 : vector<1x8x128xf32> to vector<8x128xf32>
    %96 = vector.shape_cast %93 : vector<8x128xf32> to vector<1x8x128xf32>
    tpu.vector_store %arg4[%c2_37, %c0_38, %c0_39], %96 {strides = array<i32>} : memref<3x8x128xf32, #tpu.memory_space<vmem>>, vector<1x8x128xf32>,
    return
  }
  func.func @transform_0(%arg0: i32) -> (i32, i32, i32) {
    %c0_i32 = arith.constant 0 : i32
    %c0_i32_0 = arith.constant 0 : i32
    %c0_i32_1 = arith.constant 0 : i32
    return %c0_i32, %arg0, %c0_i32_0 : i32, i32, i32
  }
  func.func @transform_1(%arg0: i32) -> (i32, i32, i32) {
    %c0_i32 = arith.constant 0 : i32
    %c0_i32_0 = arith.constant 0 : i32
    %c0_i32_1 = arith.constant 0 : i32
    return %c0_i32, %arg0, %c0_i32_0 : i32, i32, i32
  }
  func.func @transform_2(%arg0: i32) -> (i32, i32, i32) {
    %c0_i32 = arith.constant 0 : i32
    %c0_i32_0 = arith.constant 0 : i32
    %c0_i32_1 = arith.constant 0 : i32
    return %c0_i32, %arg0, %c0_i32_0 : i32, i32, i32
  }
  func.func @transform_3(%arg0: i32) -> (i32, i32, i32) {
    %c0_i32 = arith.constant 0 : i32
    %c0_i32_0 = arith.constant 0 : i32
    %c0_i32_1 = arith.constant 0 : i32
    return %c0_i32, %arg0, %c0_i32_0 : i32, i32, i32
  }
}

</mosaic_0001>

<llo_original>
// kernel: tpu_custom_call.1
$region0: #{tpu_custom_call.1}
  #allocation0 [shape = 'u32[]', space=smem, size = 0x4, offset = 0x4, fixed_abs, tag = 'smem constant byte address 0x4 - core index']
  #allocation1 [shape = 'u32[72,128]{1,0:T(1,128)}', space=vmem, size = 0x9000, scoped, tag = 'internal scratch']
  %s0 = inlined_call_operand.vmem [shape: f32[3,8,128], index: 0, kind: input, shape index: {}]
  %s1 = inlined_call_operand.hbm [shape: f32[3,8,128], index: 1, kind: input, shape index: {}, may-alias: {1,3}]
  %s2 = inlined_call_operand.vmem [shape: f32[3,8,128], index: 2, kind: input, shape index: {}]
  %s3 = inlined_call_operand.hbm [shape: f32[3,8,128], index: 3, kind: output, shape index: {}, may-alias: {1,3}]
  %s4 = sld [smem:[#allocation0]]
  $region26: #{tpu_custom_call.1} parent=0
    _
  %s6 = ssub.s32 1, %s4
  %s7 = scalar_select 0, %s6, %s4
  $region1: #{tpu_custom_call.1} parent=0
    #allocation2 [shape = 'u8[12288]{0}', space=vmem, size = 0x3000, scoped, tag = 'input window, operand 1, single buffered']
    #allocation3 [shape = 's32[1]{0}', space=sflag, size = 0x4, scoped, tag = 'scoped memory for tpu_custom_call.1']
    #allocation4 [shape = 's32[1]{0}', space=sflag, size = 0x4, scoped, tag = 'scoped memory for tpu_custom_call.1']
    #allocation5 [shape = 'u8[12288]{0}', space=vmem, size = 0x3000, scoped, tag = 'output window, operand 0, single buffered']
    %8 = vsyncpa [#allocation3], 0
    %9 = vsyncpa [#allocation4], 0
    // Predicated region
    $region2: #{tpu_custom_call.1} parent=1 // pred_check
      _
    $region3: #{tpu_custom_call.1} parent=1 // pred_check_branch
      %11 = sbr.rel (0) target = $region5
    $region4: #{tpu_custom_call.1} parent=1 // pred_region
      _
    $region5: #{tpu_custom_call.1} parent=1 // pred_fallthru
      _
    // Predicated region
    $region6: #{tpu_custom_call.1} parent=1 // pred_check
      _
    $region7: #{tpu_custom_call.1} parent=1 // pred_check_branch
      %13 = sbr.rel (0) target = $region9
    $region8: #{tpu_custom_call.1} parent=1 // pred_region
      %15 = vsyncadd [#allocation3], 0
      %s16 = sshll.u32 %s1, 4
      %s17 = int_to_ptr.hbm [resolvable:$true] %s16
      %s18 = sshll.u32 [#allocation2], 4
      %s19 = int_to_ptr.vmem [resolvable:$true] %s18
      %24 = dma.hbm_to_vmem [thread:$0]  %s17, 384, %s19, [#allocation3], 128, 128, 8
    $region9: #{tpu_custom_call.1} parent=1 // pred_fallthru
      _
    // Predicated region
    $region10: #{tpu_custom_call.1} parent=1 // pred_check
      _
    $region11: #{tpu_custom_call.1} parent=1 // pred_check_branch
      %26 = sbr.rel (0) target = $region13
    $region12: #{tpu_custom_call.1} parent=1 // pred_region
      _
    $region13: #{tpu_custom_call.1} parent=1 // pred_fallthru
      _
    // Predicated region
    $region14: #{tpu_custom_call.1} parent=1 // pred_check
      _
    $region15: #{tpu_custom_call.1} parent=1 // pred_check_branch
      %28 = sbr.rel (0) target = $region17
    $region16: #{tpu_custom_call.1} parent=1 // pred_region
      %30 = dma.done [#allocation3], 384
    $region17: #{tpu_custom_call.1} parent=1 // pred_fallthru
      _
    %v31 = vld [vmem:[%s0] sm:$0xff]
    %s32 = scalar_lea.vmem %s0, 8
    %v33 = vld [vmem:[%s32] sm:$0xff]
    %s34 = scalar_lea.vmem %s0, 16
    %v35 = vld [vmem:[%s34] sm:$0xff]
    %v36 = vld [vmem:[%s2] sm:$0xff]
    %s37 = scalar_lea.vmem %s2, 8
    %v38 = vld [vmem:[%s37] sm:$0xff]
    %s39 = scalar_lea.vmem %s2, 16
    %v40 = vld [vmem:[%s39] sm:$0xff]
    %v41 = vld [vmem:[#allocation2] sm:$0xff]
    %v42 = vsub.f32 %v41, %v31
    %s43 = scalar_lea.vmem [#allocation2], 8
    %v44 = vld [vmem:[%s43] sm:$0xff]
    %v45 = vsub.f32 %v44, %v33
    %s46 = scalar_lea.vmem [#allocation2], 16
    %v47 = vld [vmem:[%s46] sm:$0xff]
    %v48 = vsub.f32 %v47, %v35
    %v49 = vmul.f32 %v42, %v36
    %v50 = vmul.f32 %v45, %v38
    %v51 = vadd.f32 %v49, %v50
    %v52 = vmul.f32 %v48, %v40
    %v53 = vadd.f32 %v51, %v52
    %vm54 = vcmp.lt.f32.partialorder %v53, 0.0
    %v55 = vmul.f32 %v36, %v36
    %v56 = vmul.f32 %v38, %v38
    %v57 = vadd.f32 %v55, %v56
    %v58 = vmul.f32 %v40, %v40
    %v59 = vadd.f32 %v57, %v58
    %v60 = vmul.f32 %v42, %v42
    %v61 = vmul.f32 %v45, %v45
    %v62 = vadd.f32 %v60, %v61
    %v63 = vmul.f32 %v48, %v48
    %v64 = vadd.f32 %v62, %v63
    %v65 = vmul.f32 %v59, %v64
    %v66 = vmul.f32 %v53, %v53
    %v67 = vsub.f32 %v65, %v66
    %v68 = vmax.f32 %v67, 0.0
    %v69 = vmul.f32 %v42, %v59
    %v70 = vmul.f32 %v36, %v53
    %v71 = vsub.f32 %v69, %v70
    %v72 = vmul.f32 %v45, %v59
    %v73 = vmul.f32 %v38, %v53
    %v74 = vsub.f32 %v72, %v73
    %v75 = vmul.f32 %v48, %v59
    %v76 = vmul.f32 %v40, %v53
    %v77 = vsub.f32 %v75, %v76
    %v78 = vmul.f32 %v68, %v59
    %v79 = vadd.f32 %v78, 1e-18
    %v80 = vrsqrt.pop %v79
    %v81 = vmul.f32 %v80, %v79
    %v82 = vmul.f32 %v81, %v80
    %v83 = vmul.f32 0.5, %v82
    %v84 = vsub.f32 1.5, %v83
    %v85 = vmul.f32 %v80, %v84
    %vm86 = vweird.f32 %v79
    %vm87 = vweird.f32 %v80
    %vm88 = vmor %vm86, %vm87
    %v89 = vsel %vm88, %v80, %v85
    %vm90 = vcmp.lt.f32.partialorder %v68, 1e-12
    %vm91 = vmand %vm54, %vm90
    %v92 = vsel %vm91, 0.0, %v89
    %v93 = vmul.f32 %v42, %v71
    %v94 = vmul.f32 %v93, %v92
    %v95 = vmul.f32 %v45, %v74
    %v96 = vmul.f32 %v95, %v92
    %v97 = vmul.f32 %v48, %v77
    %v98 = vmul.f32 %v97, %v92
    %v99 = vsel %vm54, %v94, %v42
    %v100 = vsel %vm54, %v96, %v45
    %v101 = vsel %vm54, %v98, %v48
    %v102 = vmul.f32 %v99, %v99
    %v103 = vmul.f32 %v100, %v100
    %v104 = vadd.f32 %v102, %v103
    %v105 = vmul.f32 %v101, %v101
    %v106 = vadd.f32 %v104, %v105
    %v107 = vadd.f32 %v106, 1e-18
    %v108 = vrsqrt.pop %v107
    %v109 = vmul.f32 %v108, %v107
    %v110 = vmul.f32 %v109, %v108
    %v111 = vmul.f32 0.5, %v110
    %v112 = vsub.f32 1.5, %v111
    %v113 = vmul.f32 %v108, %v112
    %vm114 = vweird.f32 %v107
    %vm115 = vweird.f32 %v108
    %vm116 = vmor %vm114, %vm115
    %v117 = vsel %vm116, %v108, %v113
    %v118 = vmul.f32 %v117, 0.05
    %v119 = vmin.f32 %v118, 1.0
    %v120 = vmul.f32 %v99, %v119
    %v121 = vadd.f32 %v31, %v120
    %122 = vst [vmem:[#allocation5] sm:$0xff] %v121
    %v123 = vmul.f32 %v100, %v119
    %v124 = vadd.f32 %v33, %v123
    %s125 = scalar_lea.vmem [#allocation5], 8
    %126 = vst [vmem:[%s125] sm:$0xff] %v124
    %v127 = vmul.f32 %v101, %v119
    %v128 = vadd.f32 %v35, %v127
    %s129 = scalar_lea.vmem [#allocation5], 16
    %130 = vst [vmem:[%s129] sm:$0xff] %v128
    // Predicated region
    $region18: #{tpu_custom_call.1} parent=1 // pred_check
      _
    $region19: #{tpu_custom_call.1} parent=1 // pred_check_branch
      %132 = sbr.rel (0) target = $region21
    $region20: #{tpu_custom_call.1} parent=1 // pred_region
      %134 = vsyncadd [#allocation4], 0
      %s135 = sshll.u32 [#allocation5], 4
      %s136 = int_to_ptr.vmem [resolvable:$true] %s135
      %s137 = sshll.u32 %s3, 4
      %s138 = int_to_ptr.hbm [resolvable:$true] %s137
      %143 = dma.vmem_to_hbm [thread:$0]  %s136, 384, %s138, [#allocation4], 128, 128, 8
    $region21: #{tpu_custom_call.1} parent=1 // pred_fallthru
      _
    // Predicated region
    $region22: #{tpu_custom_call.1} parent=1 // pred_check
      _
    $region23: #{tpu_custom_call.1} parent=1 // pred_check_branch
      %145 = sbr.rel (0) target = $region25
    $region24: #{tpu_custom_call.1} parent=1 // pred_region
      %147 = dma.done [#allocation4], 384
    $region25: #{tpu_custom_call.1} parent=1 // pred_fallthru
      _
    %148 = vsyncpa [#allocation3], 1
    %149 = vsyncpa [#allocation4], 1

</llo_original>
